<compile_context>
chip_gen: v6e
topology: v6e:2x2x1
jax: 0.10.0
libtpu: 0.0.40
codegen_flags: <defaults>
</compile_context>

<pallas_src>
import functools
import math

import jax
import jax.numpy as jnp
from jax.experimental import pallas as pl
from jax.experimental.pallas import tpu as pltpu


# ----------------------------------------------------------------------------
# helpers
# ----------------------------------------------------------------------------
def _round_up(x, m):
    return ((x + m - 1) // m) * m


def _gelu(x):
    # PreSumm's gelu (tanh approximation) used by PositionwiseFeedForward.
    return 0.5 * x * (1.0 + jnp.tanh(math.sqrt(2.0 / math.pi)
                                     * (x + 0.044715 * x * x * x)))


def _choose_row_tile(m_pad, max_tile=256):
    """Largest multiple-of-8 divisor of m_pad that is <= max_tile and (when possible)
    leaves at least 2 grid steps so both v7x TensorCores get work.
    max_tile=256 keeps the f32 activation tiles inside the conservative v7x/v5e
    scoped-VMEM budget; on v6e it can be raised to 512."""
    cap = min(max_tile, m_pad if m_pad <= 8 else m_pad // 2)
    cap = max(cap, 8)
    best = 8
    t = 8
    while t <= cap:
        if m_pad % t == 0:
            best = t
        t += 8
    return best


# ----------------------------------------------------------------------------
# Fused (optional LayerNorm) -> matmul -> (optional activation) -> (optional residual)
# ----------------------------------------------------------------------------
def _fused_linear_kernel(*refs, eps, has_ln, activation, has_residual):
    i = 0
    x_ref = refs[i]; i += 1
    if has_ln:
        g_ref, bt_ref = refs[i], refs[i + 1]; i += 2
    w_ref, b_ref = refs[i], refs[i + 1]; i += 2
    if has_residual:
        res_ref = refs[i]; i += 1
    o_ref = refs[i]

    x = x_ref[...]                                           # (TILE_M, K) f32
    if has_ln:
        mu = jnp.mean(x, axis=-1, keepdims=True)
        xc = x - mu
        var = jnp.mean(xc * xc, axis=-1, keepdims=True)
        x = xc * jax.lax.rsqrt(var + eps) * g_ref[...] + bt_ref[...]
    # bf16 cast only at the MXU operand (weights are stored bf16); f32 accumulation.
    y = jnp.dot(x.astype(w_ref.dtype), w_ref[...],
                preferred_element_type=jnp.float32) + b_ref[...]
    if activation is not None:
        y = activation(y)
    if has_residual:
        y = y + res_ref[...]                                  # free VALU filler under MXU
    o_ref[...] = y.astype(o_ref.dtype)


def fused_linear(x, w_t, bias, *, ln=None, activation=None, residual=None,
                 eps=1e-6, tile_m=256):
    """y = [LN](x) @ w_t + bias, optionally activation and residual add.
    w_t is pre-transposed (K, N) and may be bf16 (prepared once at load time)."""
    m_pad, k = x.shape
    n = w_t.shape[1]
    has_ln = ln is not None
    has_res = residual is not None

    inputs = [x]
    in_specs = [pl.BlockSpec((tile_m, k), lambda i: (i, 0))]          # pipelined row tile
    if has_ln:
        gamma, beta = ln
        inputs += [gamma.reshape(1, k), beta.reshape(1, k)]
        in_specs += [pl.BlockSpec((1, k), lambda i: (0, 0)),
                     pl.BlockSpec((1, k), lambda i: (0, 0))]
    inputs += [w_t, bias.reshape(1, n)]
    in_specs += [pl.BlockSpec((k, n), lambda i: (0, 0)),              # resident weight
                 pl.BlockSpec((1, n), lambda i: (0, 0))]              # resident bias
    if has_res:
        inputs += [residual]
        in_specs += [pl.BlockSpec((tile_m, n), lambda i: (i, 0))]     # pipelined residual

    w_bytes = int(w_t.size) * w_t.dtype.itemsize
    flops = 2 * m_pad * k * n + (7 * m_pad * k if has_ln else 0) \
        + (m_pad * n if has_res else 0)
    trans = m_pad * n if activation is not None else 0
    bytes_accessed = 4 * m_pad * k + w_bytes + 4 * n + 4 * m_pad * n \
        + (4 * m_pad * n if has_res else 0) + (8 * k if has_ln else 0)

    return pl.pallas_call(
        functools.partial(_fused_linear_kernel, eps=eps, has_ln=has_ln,
                          activation=activation, has_residual=has_res),
        out_shape=jax.ShapeDtypeStruct((m_pad, n), jnp.float32),
        grid_spec=pltpu.PrefetchScalarGridSpec(
            num_scalar_prefetch=0,
            grid=(m_pad // tile_m,),
            in_specs=in_specs,
            out_specs=pl.BlockSpec((tile_m, n), lambda i: (i, 0)),
        ),
        compiler_params=pltpu.CompilerParams(dimension_semantics=("parallel",)),
        cost_estimate=pl.CostEstimate(flops=int(flops), transcendentals=int(trans),
                                      bytes_accessed=int(bytes_accessed)),
    )(*inputs)


# ----------------------------------------------------------------------------
# Self-attention: one batch element (all heads) per grid step, consuming the
# fused (B, S, 3H) QKV slab directly -- no HBM head transposes.
# ----------------------------------------------------------------------------
def _attention_kernel(qkv_ref, bias_ref, o_ref, *, heads, dh, scale):
    # qkv_ref: (1, S, 3H) f32   bias_ref: (1, 1, S)   o_ref: (1, S, H)
    qkv = qkv_ref[0]                       # (S, 3H)
    bias = bias_ref[0]                     # (1, S): -1e18 at padded key positions
    h = heads * dh
    ctxs = []
    for hd in range(heads):                # static unroll over heads (VMEM lane slices)
        q = qkv[:, hd * dh:(hd + 1) * dh] * scale
        k = qkv[:, h + hd * dh: h + (hd + 1) * dh]
        v = qkv[:, 2 * h + hd * dh: 2 * h + (hd + 1) * dh]
        # scores[q, k] = sum_d q[q, d] * k[k, d]  (contract last dims, no explicit k^T)
        s = jax.lax.dot_general(q, k, (((1,), (1,)), ((), ())),
                                preferred_element_type=jnp.float32)      # (S, S)
        s = s + bias
        m = jnp.max(s, axis=-1, keepdims=True)
        p = jnp.exp(s - m)
        l = jnp.sum(p, axis=-1, keepdims=True)
        attn = p * pl.reciprocal(l, approx=True)      # EUP reciprocal, not a VALU divide
        ctxs.append(jnp.dot(attn, v, preferred_element_type=jnp.float32))
    # head-contiguous write: exactly the layout the following wo matmul consumes.
    o_ref[...] = jnp.concatenate(ctxs, axis=-1)[None].astype(o_ref.dtype)
    # TODO(synk): the score/context matmuls are kept f32 (activation x activation);
    # they can be flipped to bf16 if the accuracy budget allows.


def attention(qkv, attn_bias, *, heads):
    b, s_pad, three_h = qkv.shape
    h = three_h // 3
    dh = h // heads
    scale = 1.0 / math.sqrt(dh)
    return pl.pallas_call(
        functools.partial(_attention_kernel, heads=heads, dh=dh, scale=scale),
        out_shape=jax.ShapeDtypeStruct((b, s_pad, h), jnp.float32),
        grid_spec=pltpu.PrefetchScalarGridSpec(
            num_scalar_prefetch=0,
            grid=(b,),
            in_specs=[
                pl.BlockSpec((1, s_pad, three_h), lambda i: (i, 0, 0)),
                pl.BlockSpec((1, 1, s_pad), lambda i: (i, 0, 0)),
            ],
            out_specs=pl.BlockSpec((1, s_pad, h), lambda i: (i, 0, 0)),
        ),
        compiler_params=pltpu.CompilerParams(dimension_semantics=("parallel",)),
        cost_estimate=pl.CostEstimate(
            flops=int(4 * b * heads * s_pad * s_pad * dh),
            transcendentals=int(b * heads * s_pad * (s_pad + 1)),
            bytes_accessed=int(4 * (b * s_pad * three_h + b * s_pad + b * s_pad * h))),
    )(qkv, attn_bias)


# ----------------------------------------------------------------------------
# Fused final LayerNorm + classifier head (wo -> sigmoid -> mask)
# ----------------------------------------------------------------------------
def _ln_classifier_kernel(x_ref, g_ref, bt_ref, w_ref, mask_ref, b_ref, o_ref, *, eps):
    # x_ref: (TILE_M, H)  g/bt/w_ref: (1, H)  mask_ref/o_ref: (TILE_M, 1)  b_ref: (1,1) SMEM
    x = x_ref[...]
    mu = jnp.mean(x, axis=-1, keepdims=True)
    xc = x - mu
    var = jnp.mean(xc * xc, axis=-1, keepdims=True)
    xn = xc * jax.lax.rsqrt(var + eps) * g_ref[...] + bt_ref[...]
    # VPU multiply + lane reduce instead of a skinny (H, 1) MXU matvec.
    logit = jnp.sum(xn * w_ref[...], axis=-1, keepdims=True) + b_ref[0, 0]   # (TILE_M, 1)
    o_ref[...] = jax.nn.sigmoid(logit) * mask_ref[...]


def layernorm_classifier(x, gamma, beta, weight, bias, mask_rows, *, tile_m, eps=1e-6):
    """sigmoid(LayerNorm(x) @ weight.T + bias) * mask in a single HBM pass over x."""
    m_pad, h = x.shape
    out = pl.pallas_call(
        functools.partial(_ln_classifier_kernel, eps=eps),
        out_shape=jax.ShapeDtypeStruct((m_pad, 1), jnp.float32),
        grid_spec=pltpu.PrefetchScalarGridSpec(
            num_scalar_prefetch=0,
            grid=(m_pad // tile_m,),
            in_specs=[
                pl.BlockSpec((tile_m, h), lambda i: (i, 0)),    # x row tile (pipelined)
                pl.BlockSpec((1, h), lambda i: (0, 0)),         # final-LN gamma
                pl.BlockSpec((1, h), lambda i: (0, 0)),         # final-LN beta
                pl.BlockSpec((1, h), lambda i: (0, 0)),         # wo weight, lane-major
                pl.BlockSpec((tile_m, 1), lambda i: (i, 0)),    # mask row tile
                pl.BlockSpec((1, 1), lambda i: (0, 0),
                             memory_space=pltpu.MemorySpace.SMEM),  # wo bias scalar
            ],
            out_specs=pl.BlockSpec((tile_m, 1), lambda i: (i, 0)),
        ),
        compiler_params=pltpu.CompilerParams(dimension_semantics=("parallel",)),
        cost_estimate=pl.CostEstimate(
            flops=int(9 * m_pad * h),
            transcendentals=int(2 * m_pad),
            bytes_accessed=int(4 * (m_pad * h + 3 * h + 2 * m_pad + 1))),
    )(x, gamma.reshape(1, h), beta.reshape(1, h), weight.reshape(1, h), mask_rows,
      bias.reshape(1, 1))
    return out[:, 0]


# ----------------------------------------------------------------------------
# Parameter preparation (one-time, load-time): transpose to (K, N), fuse QKV, bf16
# ----------------------------------------------------------------------------
def prepare_params(params):
    def wt(w):
        return jnp.transpose(w).astype(jnp.bfloat16)     # (N, K) -> (K, N) bf16

    layers = []
    for lp in params["layers"]:
        layers.append(dict(
            wqkv_t=jnp.concatenate([wt(lp["wq"]), wt(lp["wk"]), wt(lp["wv"])], axis=1),
            bqkv=jnp.concatenate([lp["bq"], lp["bk"], lp["bv"]]),
            wo_t=wt(lp["wo"]), bo=lp["bo"],
            w1_t=wt(lp["w1"]), b1=lp["b1"],
            w2_t=wt(lp["w2"]), b2=lp["b2"],
            ln_g=lp["ln_g"], ln_b=lp["ln_b"],
            ffn_ln_g=lp["ffn_ln_g"], ffn_ln_b=lp["ffn_ln_b"],
        ))
    return dict(layers=layers,
                final_ln_g=params["final_ln_g"], final_ln_b=params["final_ln_b"],
                cls_w=params["cls_w"], cls_b=params["cls_b"])


# ----------------------------------------------------------------------------
# ExtTransformerEncoder forward (Pallas) + pure-JAX reference
# ----------------------------------------------------------------------------
def sinusoidal_positional_encoding(s, h):
    # Default `add_sent_struct_emb=False` branch (SinPositionalEncoding).
    pos = jnp.arange(s, dtype=jnp.float32)[:, None]
    div = jnp.exp(jnp.arange(0, h, 2, dtype=jnp.float32) * -(math.log(10000.0) / h))
    pe = jnp.zeros((s, h), dtype=jnp.float32)
    pe = pe.at[:, 0::2].set(jnp.sin(pos * div))
    pe = pe.at[:, 1::2].set(jnp.cos(pos * div))
    return pe[None]                       # (1, S, H)


def ext_transformer_encoder_forward(top_vecs, mask, prepared, *, heads):
    """top_vecs: (B, S, H) f32, mask: (B, S) bool (True = real sentence) -> (B, S) scores."""
    b, s, h = top_vecs.shape
    s_pad = _round_up(s, 8)
    m_pad = b * s_pad
    tile_m = _choose_row_tile(m_pad)

    mask_f = mask.astype(jnp.float32)
    x = top_vecs * mask_f[:, :, None] + sinusoidal_positional_encoding(s, h)   # (B, S, H)
    # Pad the sentence axis ONCE. Padded rows are zero, padded keys are killed by the
    # additive attention bias, and padded scores are sliced off at the very end -- no
    # per-pallas_call pad/slice copies inside the layer loop.
    x = jnp.pad(x, ((0, 0), (0, s_pad - s), (0, 0))).reshape(m_pad, h)
    mask_pad = jnp.pad(mask, ((0, 0), (0, s_pad - s)))                        # (B, S_pad)
    attn_bias = jnp.where(mask_pad, 0.0, -1e18).astype(jnp.float32).reshape(b, 1, s_pad)
    mask_rows = mask_pad.astype(jnp.float32).reshape(m_pad, 1)
    # TODO(synk): sentence-structure embeddings (LASentAddEmb/LPSentAddEmb/SINSentAddEmb)
    # and the section-name embedding lookup are not implemented (default sinusoidal
    # branch with section_names_embed_path == ''); dropout is identity at eval.

    for i, lp in enumerate(prepared["layers"]):
        ln = (lp["ln_g"], lp["ln_b"]) if i != 0 else None
        # (LN +) fused QKV projection: one matmul, x read from HBM once.
        qkv = fused_linear(x, lp["wqkv_t"], lp["bqkv"], ln=ln, tile_m=tile_m)  # (M_pad, 3H)
        # free reshape (contiguous split of the row axis) -- no HBM transpose.
        ctx = attention(qkv.reshape(b, s_pad, 3 * h), attn_bias, heads=heads)
        ctx = ctx.reshape(m_pad, h)
        # output projection with fused residual add.
        out = fused_linear(ctx, lp["wo_t"], lp["bo"], residual=x, tile_m=tile_m)
        # PositionwiseFeedForward: fused LN -> w1 -> gelu, then w2 with fused residual.
        ff = fused_linear(out, lp["w1_t"], lp["b1"],
                          ln=(lp["ffn_ln_g"], lp["ffn_ln_b"]),
                          activation=_gelu, tile_m=tile_m)
        x = fused_linear(ff, lp["w2_t"], lp["b2"], residual=out, tile_m=tile_m)

    scores = layernorm_classifier(x, prepared["final_ln_g"], prepared["final_ln_b"],
                                  prepared["cls_w"], prepared["cls_b"], mask_rows,
                                  tile_m=tile_m)
    return scores.reshape(b, s_pad)[:, :s]


def _reference_forward(top_vecs, mask, params, *, heads):
    # Pure-JAX reference with the SAME mixed precision as the Pallas path
    # (bf16 weights / bf16-cast matmul operands, f32 accumulation and f32 elementwise).
    b, s, h = top_vecs.shape
    dh = h // heads
    hi = jax.lax.Precision.HIGHEST
    mask_f = mask.astype(jnp.float32)
    x = top_vecs * mask_f[:, :, None] + sinusoidal_positional_encoding(s, h)
    bias = jnp.where(mask, 0.0, -1e18).astype(jnp.float32)[:, None, None, :]

    def ln(t, g, bb, eps=1e-6):
        mu = jnp.mean(t, axis=-1, keepdims=True)
        var = jnp.mean((t - mu) ** 2, axis=-1, keepdims=True)
        return (t - mu) * jax.lax.rsqrt(var + eps) * g + bb

    def lin(t, w, bb):
        return jnp.einsum("...k,nk->...n", t.astype(jnp.bfloat16),
                          w.astype(jnp.bfloat16),
                          preferred_element_type=jnp.float32) + bb

    def split(t):
        return t.reshape(b, s, heads, dh).transpose(0, 2, 1, 3)

    for i, lp in enumerate(params["layers"]):
        inputs = x
        x_in = ln(inputs, lp["ln_g"], lp["ln_b"]) if i != 0 else inputs
        q = split(lin(x_in, lp["wq"], lp["bq"]))
        k = split(lin(x_in, lp["wk"], lp["bk"]))
        v = split(lin(x_in, lp["wv"], lp["bv"]))
        sc = jnp.einsum("bhqd,bhkd->bhqk", q / math.sqrt(dh), k, precision=hi) + bias
        attn = jax.nn.softmax(sc, axis=-1)
        ctx = jnp.einsum("bhqk,bhkd->bhqd", attn, v,
                         precision=hi).transpose(0, 2, 1, 3).reshape(b, s, h)
        out = lin(ctx, lp["wo"], lp["bo"]) + inputs
        x = lin(_gelu(lin(ln(out, lp["ffn_ln_g"], lp["ffn_ln_b"]), lp["w1"], lp["b1"])),
                lp["w2"], lp["b2"]) + out
    xf = ln(x, params["final_ln_g"], params["final_ln_b"])
    logits = jnp.einsum("bsh,oh->bso", xf, params["cls_w"], precision=hi) + params["cls_b"]
    return jax.nn.sigmoid(logits)[..., 0] * mask_f


# ----------------------------------------------------------------------------
# parameter init + demo
# ----------------------------------------------------------------------------
def init_params(key, h, d_ff, heads, num_layers):
    del heads

    def dense(k, out_dim, in_dim):
        kw, kb = jax.random.split(k)
        bound = 1.0 / math.sqrt(in_dim)
        w = jax.random.uniform(kw, (out_dim, in_dim), minval=-bound, maxval=bound,
                               dtype=jnp.float32)
        bb = jax.random.uniform(kb, (out_dim,), minval=-bound, maxval=bound,
                                dtype=jnp.float32)
        return w, bb

    def ln_params(k):
        kg, kb = jax.random.split(k)
        return (1.0 + 0.05 * jax.random.normal(kg, (h,), dtype=jnp.float32),
                0.05 * jax.random.normal(kb, (h,), dtype=jnp.float32))

    keys = jax.random.split(key, num_layers + 1)
    layers = []
    for i in range(num_layers):
        ks = jax.random.split(keys[i], 8)
        wq, bq = dense(ks[0], h, h)
        wk, bk = dense(ks[1], h, h)
        wv, bv = dense(ks[2], h, h)
        wo, bo = dense(ks[3], h, h)
        w1, b1 = dense(ks[4], d_ff, h)
        w2, b2 = dense(ks[5], h, d_ff)
        ln_g, ln_b = ln_params(ks[6])
        ffn_ln_g, ffn_ln_b = ln_params(ks[7])
        layers.append(dict(wq=wq, bq=bq, wk=wk, bk=bk, wv=wv, bv=bv, wo=wo, bo=bo,
                           w1=w1, b1=b1, w2=w2, b2=b2, ln_g=ln_g, ln_b=ln_b,
                           ffn_ln_g=ffn_ln_g, ffn_ln_b=ffn_ln_b))
    kf = jax.random.split(keys[-1], 2)
    cls_w, cls_b = dense(kf[0], 1, h)
    final_ln_g, final_ln_b = ln_params(kf[1])
    return dict(layers=layers, final_ln_g=final_ln_g, final_ln_b=final_ln_b,
                cls_w=cls_w, cls_b=cls_b)


if __name__ == "__main__":
    B, S, H = 2, 8, 32                 # batch, n_sentences, d_model
    HEADS, D_FF, N_LAYERS = 4, 64, 2

    key = jax.random.PRNGKey(0)
    k_x, k_p = jax.random.split(key)
    top_vecs = jax.random.normal(k_x, (B, S, H), dtype=jnp.float32)
    lengths = jnp.array([S, 5])
    mask = jnp.arange(S)[None, :] < lengths[:, None]     # (B, S) bool, True = real sentence

    params = init_params(k_p, H, D_FF, HEADS, N_LAYERS)
    prepared = prepare_params(params)    # load-time repack: (K,N) bf16 weights, fused QKV

    sent_scores = ext_transformer_encoder_forward(top_vecs, mask, prepared, heads=HEADS)
    sent_scores = jax.block_until_ready(sent_scores)

    ref = _reference_forward(top_vecs, mask, params, heads=HEADS)
    assert sent_scores.shape == (B, S)
    assert bool(jnp.all(jnp.isfinite(sent_scores)))
    max_err = float(jnp.max(jnp.abs(sent_scores - ref)))
    assert max_err < 2e-2, f"mismatch vs pure-JAX reference, max abs err = {max_err}"

    print("KERNEL_OK")
</pallas_src>

<mosaic_0001>
module attributes {stable_mosaic.version = 11 : i64} {
  func.func @_fused_linear_kernel(%arg0: i32, %arg1: memref<8x32xf32, #tpu.memory_space<vmem>>, %arg2: memref<32x96xbf16, #tpu.memory_space<vmem>>, %arg3: memref<1x96xf32, #tpu.memory_space<vmem>>, %arg4: memref<8x96xf32, #tpu.memory_space<vmem>>) attributes {dimension_semantics = [#tpu.dimension_semantics<parallel>], iteration_bounds = array<i64: 2>, scalar_prefetch = 0 : i64, scratch_operands = 0 : i64, tpu.core_type = #tpu.core_type<tc>, window_params = [{transform_indices = @transform_0, window_bounds = array<i64: 8, 32>}, {pipeline_mode = #tpu.pipeline_mode<synchronous>, transform_indices = @transform_1, window_bounds = array<i64: 32, 96>}, {pipeline_mode = #tpu.pipeline_mode<synchronous>, transform_indices = @transform_2, window_bounds = array<i64: 1, 96>}, {transform_indices = @transform_3, window_bounds = array<i64: 8, 96>}]} {
    %c0 = arith.constant 0 : index
    %c0_0 = arith.constant 0 : index
    %0 = vector.load %arg1[%c0, %c0_0] : memref<8x32xf32, #tpu.memory_space<vmem>>, vector<8x32xf32>
    %1 = arith.truncf %0 : vector<8x32xf32> to vector<8x32xbf16>
    %c0_1 = arith.constant 0 : index
    %c0_2 = arith.constant 0 : index
    %2 = vector.load %arg2[%c0_1, %c0_2] : memref<32x96xbf16, #tpu.memory_space<vmem>>, vector<32x96xbf16>
    %cst = arith.constant dense<0.000000e+00> : vector<8x96xf32>
    %3 = tpu.matmul %1, %2, %cst {dimension_numbers = #tpu.dot_dimension_numbers<[1], [0], [0], [1], [0, 0, 1, 1], [], []>} : vector<8x32xbf16>, vector<32x96xbf16>, vector<8x96xf32> -> vector<8x96xf32>
    %c0_3 = arith.constant 0 : index
    %c0_4 = arith.constant 0 : index
    %4 = vector.load %arg3[%c0_3, %c0_4] : memref<1x96xf32, #tpu.memory_space<vmem>>, vector<1x96xf32>
    %5 = vector.broadcast %4 : vector<1x96xf32> to vector<8x96xf32>
    %6 = arith.addf %3, %5 : vector<8x96xf32>
    %c0_5 = arith.constant 0 : index
    %c0_6 = arith.constant 0 : index
    %7 = vector.load %arg4[%c0_5, %c0_6] : memref<8x96xf32, #tpu.memory_space<vmem>>, vector<8x96xf32>
    tpu.vector_store %arg4[%c0_5, %c0_6], %6 {strides = array<i32>} : memref<8x96xf32, #tpu.memory_space<vmem>>, vector<8x96xf32>,
    return
  }
  func.func @transform_0(%arg0: i32) -> (i32, i32) {
    %c0_i32 = arith.constant 0 : i32
    %c0_i32_0 = arith.constant 0 : i32
    return %arg0, %c0_i32 : i32, i32
  }
  func.func @transform_1(%arg0: i32) -> (i32, i32) {
    %c0_i32 = arith.constant 0 : i32
    %c0_i32_0 = arith.constant 0 : i32
    %c0_i32_1 = arith.constant 0 : i32
    return %c0_i32, %c0_i32_0 : i32, i32
  }
  func.func @transform_2(%arg0: i32) -> (i32, i32) {
    %c0_i32 = arith.constant 0 : i32
    %c0_i32_0 = arith.constant 0 : i32
    %c0_i32_1 = arith.constant 0 : i32
    return %c0_i32, %c0_i32_0 : i32, i32
  }
  func.func @transform_3(%arg0: i32) -> (i32, i32) {
    %c0_i32 = arith.constant 0 : i32
    %c0_i32_0 = arith.constant 0 : i32
    return %arg0, %c0_i32 : i32, i32
  }
}

</mosaic_0001>

<llo_original>
// kernel: tpu_custom_call.1
$region0: #{tpu_custom_call.1}
  #allocation0 [shape = 'u32[]', space=smem, size = 0x4, offset = 0x4, fixed_abs, tag = 'smem constant byte address 0x4 - core index']
  #allocation1 [shape = 'u32[144,128]{1,0:T(1,128)}', space=vmem, size = 0x12000, scoped, tag = 'internal scratch']
  %s0 = inlined_call_operand.hbm [shape: f32[16,32], index: 0, kind: input, shape index: {}]
  %s1 = inlined_call_operand.hbm [shape: bf16[32,96], index: 1, kind: input, shape index: {}]
  %s2 = inlined_call_operand.vmem [shape: f32[1,96], index: 2, kind: input, shape index: {}]
  %s3 = inlined_call_operand.hbm [shape: f32[16,96], index: 3, kind: output, shape index: {}]
  %s4 = sld [smem:[#allocation0]]
  $region53: #{tpu_custom_call.1} parent=0
    _
  %s6 = ssub.s32 1, %s4
  %s7 = scalar_select 0, %s6, %s4
  $region1: #{tpu_custom_call.1} parent=0
    #allocation2 [shape = 'u8[8192]{0}', space=vmem, size = 0x2000, scoped, tag = 'input window, operand 0']
    #allocation3 [shape = 's32[2]{0}', space=sflag, size = 0x8, scoped, tag = 'scoped memory for tpu_custom_call.1']
    #allocation4 [shape = 's32[2]{0}', space=sflag, size = 0x8, scoped, tag = 'scoped memory for tpu_custom_call.1']
    #allocation5 [shape = 'u8[8192]{0}', space=vmem, size = 0x2000, scoped, tag = 'input window, operand 1, single buffered']
    #allocation6 [shape = 's32[1]{0}', space=sflag, size = 0x4, scoped, tag = 'scoped memory for tpu_custom_call.1']
    #allocation7 [shape = 'u8[8192]{0}', space=vmem, size = 0x2000, scoped, tag = 'output window, operand 0']
    %8 = vsyncpa [#allocation3], 0
    %s9 = scalar_lea.sflag [#allocation3], 1
    %10 = vsyncpa %s9, 0
    %11 = vsyncpa [#allocation6], 0
    %12 = vsyncpa [#allocation4], 0
    %s13 = scalar_lea.sflag [#allocation4], 1
    %14 = vsyncpa %s13, 0
    loop: start=0, step=1, limit=4
    $region2: #{tpu_custom_call.1} parent=1 // loop_pre_header
      _
    $region3: #{tpu_custom_call.1} parent=1 // loop_header
      %s16 = sphi 0, %s20
      %p17 = scmp.ge.s32.totalorder %s16, 4
      %s26 = sphi 0, %s28
      %s29 = sphi 0, %s26
      %s30 = sphi 0, %s29
      %s46 = sphi 0, %s30
      %s50 = sphi 0, %s50
      %s52 = sphi 0, %s50
      %s53 = sphi 0, %s52
      %s67 = sphi 0, %s53
      %s71 = sphi 0, %s71
      %s73 = sphi 0, %s71
      %s74 = sphi 0, %s73
      %s88 = sphi 0, %s74
      %s94 = sphi 0, %s96
      %s97 = sphi 0, %s94
      %s98 = sphi 0, %s97
      %s114 = sphi 0, %s98
    $region4: #{tpu_custom_call.1} parent=1 // loop_header_branch
      %19 = sbr.rel (%p17) target = $region8
    $region5: #{tpu_custom_call.1} parent=1 // loop_body
      %s21 = ssub.s32 %s16, 1
      %s22 = ssub.s32 %s16, 2
      %s23 = sadd.s32 %s16, 1
      %s24 = ssub.s32 %s16, %s23
      %p25 = scmp.eq.s32.totalorder %s24, 0
      %s27 = sadd.s32 %s26, 1
      %s28 = scalar_select %p25, %s26, %s27
      %p31 = pneg %p25
      %p32 = scmp.eq.s32.totalorder %s16, 1
      %p33 = por %p31, %p32
      %p34 = scmp.ne.s32.totalorder %s26, %s29
      %p35 = scmp.eq.s32.totalorder %s16, 0
      %p36 = por %p34, %p35
      %p37 = scmp.ne.s32.totalorder %s26, %s29
      %p38 = scmp.eq.s32.totalorder %s21, 1
      %p39 = por %p37, %p38
      %p40 = scmp.ne.s32.totalorder %s29, %s30
      %p41 = scmp.eq.s32.totalorder %s21, 0
      %p42 = por %p40, %p41
      %p43 = scmp.ne.s32.totalorder %s29, %s30
      %p44 = scmp.eq.s32.totalorder %s22, 1
      %p45 = por %p43, %p44
      %p47 = scmp.ne.s32.totalorder %s30, %s46
      %p48 = scmp.eq.s32.totalorder %s22, 0
      %p49 = por %p47, %p48
      %s51 = sadd.s32 %s50, 1
      %p54 = scmp.eq.s32.totalorder %s16, 1
      %p55 = scmp.ne.s32.totalorder %s50, %s52
      %p56 = scmp.eq.s32.totalorder %s16, 0
      %p57 = por %p55, %p56
      %p58 = scmp.ne.s32.totalorder %s50, %s52
      %p59 = scmp.eq.s32.totalorder %s21, 1
      %p60 = por %p58, %p59
      %p61 = scmp.ne.s32.totalorder %s52, %s53
      %p62 = scmp.eq.s32.totalorder %s21, 0
      %p63 = por %p61, %p62
      %p64 = scmp.ne.s32.totalorder %s52, %s53
      %p65 = scmp.eq.s32.totalorder %s22, 1
      %p66 = por %p64, %p65
      %p68 = scmp.ne.s32.totalorder %s53, %s67
      %p69 = scmp.eq.s32.totalorder %s22, 0
      %p70 = por %p68, %p69
      %s72 = sadd.s32 %s71, 1
      %p75 = scmp.eq.s32.totalorder %s16, 1
      %p76 = scmp.ne.s32.totalorder %s71, %s73
      %p77 = scmp.eq.s32.totalorder %s16, 0
      %p78 = por %p76, %p77
      %p79 = scmp.ne.s32.totalorder %s71, %s73
      %p80 = scmp.eq.s32.totalorder %s21, 1
      %p81 = por %p79, %p80
      %p82 = scmp.ne.s32.totalorder %s73, %s74
      %p83 = scmp.eq.s32.totalorder %s21, 0
      %p84 = por %p82, %p83
      %p85 = scmp.ne.s32.totalorder %s73, %s74
      %p86 = scmp.eq.s32.totalorder %s22, 1
      %p87 = por %p85, %p86
      %p89 = scmp.ne.s32.totalorder %s74, %s88
      %p90 = scmp.eq.s32.totalorder %s22, 0
      %p91 = por %p89, %p90
      %s92 = ssub.s32 %s16, %s23
      %p93 = scmp.eq.s32.totalorder %s92, 0
      %s95 = sadd.s32 %s94, 1
      %s96 = scalar_select %p93, %s94, %s95
      %p99 = pneg %p93
      %p100 = scmp.eq.s32.totalorder %s16, 1
      %p101 = por %p99, %p100
      %p102 = scmp.ne.s32.totalorder %s94, %s97
      %p103 = scmp.eq.s32.totalorder %s16, 0
      %p104 = por %p102, %p103
      %p105 = scmp.ne.s32.totalorder %s94, %s97
      %p106 = scmp.eq.s32.totalorder %s21, 1
      %p107 = por %p105, %p106
      %p108 = scmp.ne.s32.totalorder %s97, %s98
      %p109 = scmp.eq.s32.totalorder %s21, 0
      %p110 = por %p108, %p109
      %p111 = scmp.ne.s32.totalorder %s97, %s98
      %p112 = scmp.eq.s32.totalorder %s22, 1
      %p113 = por %p111, %p112
      %p115 = scmp.ne.s32.totalorder %s98, %s114
      %p116 = scmp.eq.s32.totalorder %s22, 0
      %p117 = por %p115, %p116
      %p118 = scmp.le.s32.totalorder 1, %s16
      %p119 = scmp.lt.s32.totalorder %s16, 3
      %p120 = pnand %p118, %p119
      %p121 = pneg %p120
      // Predicated region
      $region9: #{tpu_custom_call.1} parent=5 // pred_check
        _
      $region10: #{tpu_custom_call.1} parent=5 // pred_check_branch
        %123 = sbr.rel (%p120) target = $region12
      $region11: #{tpu_custom_call.1} parent=5 // pred_region
        %s124 = ssub.s32 %s16, 1
        // Predicated region
        $region13: #{tpu_custom_call.1} parent=11 // pred_check
          %p125 = pneg %p63
        $region14: #{tpu_custom_call.1} parent=11 // pred_check_branch
          %127 = sbr.rel (%p125) target = $region16
        $region15: #{tpu_custom_call.1} parent=11 // pred_region
          %s129 = ssub.s32 256, 256
          %130 = vsyncadd [#allocation6], %s129
          %s131 = sshll.u32 [#allocation5], 4
          %s132 = int_to_ptr.vmem [resolvable:$true] %s131
          %137 = dma.hbm_to_vmem [thread:$0]  %s1, 256, %s132, [#allocation6], 64, 64, 4
        $region16: #{tpu_custom_call.1} parent=11 // pred_fallthru
          _
        // Predicated region
        $region17: #{tpu_custom_call.1} parent=11 // pred_check
          %p138 = pneg %p84
        $region18: #{tpu_custom_call.1} parent=11 // pred_check_branch
          %140 = sbr.rel (%p138) target = $region20
        $region19: #{tpu_custom_call.1} parent=11 // pred_region
          _
        $region20: #{tpu_custom_call.1} parent=11 // pred_fallthru
          _
      $region12: #{tpu_custom_call.1} parent=5 // pred_fallthru
        _
      %p141 = scmp.lt.s32.totalorder %s16, 2
      // Predicated region
      $region21: #{tpu_custom_call.1} parent=5 // pred_check
        %p142 = pneg %p141
      $region22: #{tpu_custom_call.1} parent=5 // pred_check_branch
        %144 = sbr.rel (%p142) target = $region24
      $region23: #{tpu_custom_call.1} parent=5 // pred_region
        // Predicated region
        $region25: #{tpu_custom_call.1} parent=23 // pred_check
          %p145 = pneg %p36
        $region26: #{tpu_custom_call.1} parent=23 // pred_check_branch
          %147 = sbr.rel (%p145) target = $region28
        $region27: #{tpu_custom_call.1} parent=23 // pred_region
          %s148 = sand.u32 %s26, 1
          %s149 = scalar_lea.sflag [#allocation3], %s148
          %s150 = sand.u32 %s26, 1
          %s151 = smul.addr %s150, 8
          %s152 = scalar_lea.vmem [#allocation2], %s151
          %s154 = ssub.s32 128, 128
          %155 = vsyncadd %s149, %s154
          %s156 = smul.addr %s16, 128
          %s157 = scalar_lea.hbm %s0, %s156
          %s159 = sshll.u32 %s152, 4
          %s160 = int_to_ptr.vmem [resolvable:$true] %s159
          %162 = dma.hbm_to_vmem [thread:$0]  %s157, 128, %s160, %s149
        $region28: #{tpu_custom_call.1} parent=23 // pred_fallthru
          _
      $region24: #{tpu_custom_call.1} parent=5 // pred_fallthru
        _
      %p163 = scmp.le.s32.totalorder 1, %s16
      %p164 = scmp.lt.s32.totalorder %s16, 3
      %p165 = pnand %p163, %p164
      %p166 = pneg %p165
      // Predicated region
      $region29: #{tpu_custom_call.1} parent=5 // pred_check
        _
      $region30: #{tpu_custom_call.1} parent=5 // pred_check_branch
        %168 = sbr.rel (%p165) target = $region32
      $region31: #{tpu_custom_call.1} parent=5 // pred_region
        %s169 = ssub.s32 %s16, 1
        %s170 = sand.u32 %s29, 1
        %s171 = scalar_lea.sflag [#allocation3], %s170
        %s172 = sand.u32 %s29, 1
        %s173 = smul.addr %s172, 8
        %s174 = scalar_lea.vmem [#allocation2], %s173
        // Predicated region
        $region33: #{tpu_custom_call.1} parent=31 // pred_check
          %p175 = pneg %p42
        $region34: #{tpu_custom_call.1} parent=31 // pred_check_branch
          %177 = sbr.rel (%p175) target = $region36
        $region35: #{tpu_custom_call.1} parent=31 // pred_region
          %178 = dma.done %s171, 128
        $region36: #{tpu_custom_call.1} parent=31 // pred_fallthru
          _
        // Predicated region
        $region37: #{tpu_custom_call.1} parent=31 // pred_check
          %p179 = pneg %p63
        $region38: #{tpu_custom_call.1} parent=31 // pred_check_branch
          %181 = sbr.rel (%p179) target = $region40
        $region39: #{tpu_custom_call.1} parent=31 // pred_region
          %182 = dma.done [#allocation6], 256
        $region40: #{tpu_custom_call.1} parent=31 // pred_fallthru
          _
        %s183 = sand.u32 %s29, 1
        %s184 = scalar_lea.sflag [#allocation3], %s183
        %s185 = sand.u32 %s29, 1
        %s186 = smul.addr %s185, 8
        %s187 = scalar_lea.vmem [#allocation2], %s186
        %p188 = pneg %p42
        %p189 = pneg %p39
        %p190 = pneg %p63
        %p191 = pneg %p60
        %p192 = pneg %p84
        %p193 = pneg %p81
        %p194 = pneg %p110
        %p195 = pneg %p107
        %s196 = sand.u32 %s97, 1
        %s197 = scalar_lea.sflag [#allocation4], %s196
        %s198 = sand.u32 %s97, 1
        %s199 = smul.addr %s198, 8
        %s200 = scalar_lea.vmem [#allocation7], %s199
        %v202 = vld [vmem:[%s174] sm:$0xff]
        %v203 = vpack.c.bf16 %v202, %v202
        %v204 = vld [vmem:[#allocation5] sm:$0xf]
        %v205 = vld [vmem:[#allocation5 + $0x4] sm:$0xf]
        %v206 = vld [vmem:[#allocation5 + $0x8] sm:$0xf]
        %v207 = vld [vmem:[#allocation5 + $0xc] sm:$0xf]
        %v208 = vld [vmem:[%s2] sm:$0x1]
        %v210 = vlaneseq
        %v211 = vshrl.u32 %v210, 7
        %v212 = vsub.s32 0, %v211
        %v213 = vrot.slane %v208, %v212
        %v219 = vunpack.c.l.b16 %v204
        %v220 = vunpack.c.l.b16 %v205
        %v221 = vunpack.c.l.b16 %v206
        %v222 = vunpack.c.l.b16 %v207
        %v223 = vpack.c.b16 %v220, %v219
        %v224 = vpack.c.b16 %v222, %v221
        %vm227 = vcmask 261120
        %v229 = vsel %vm227, %v203, 0
        %231 = vmatprep.subr.bf16.mxu0 0
        %232 = vmatpush1.bf16.msra.mxu0 0
        %233 = vmatprep.subr.bf16.mxu0 0
        %234 = vmatpush1.bf16.msra.mxu0 0
        %235 = vmatprep.subr.bf16.mxu0 0
        %236 = vmatpush1.bf16.msra.mxu0 0
        %237 = vmatprep.subr.bf16.mxu0 0
        %238 = vmatpush1.bf16.msra.mxu0 0
        %239 = vmatprep.subr.bf16.mxu0 0
        %240 = vmatpush1.bf16.msra.mxu0 0
        %241 = vmatprep.subr.bf16.mxu0 0
        %242 = vmatpush1.bf16.msra.mxu0 0
        %243 = vmatprep.subr.bf16.mxu0 0
        %244 = vmatpush1.bf16.msra.mxu0 %v224
        %245 = vmatprep.subr.bf16.mxu0 0
        %246 = vmatpush1.bf16.msra.mxu0 %v223
        %247 = vmatprep.subr.bf16.mxu0 0
        %248 = vmatpush2.bf16.msra.mxu0 0
        %249 = vmatprep.subr.bf16.mxu0 0
        %250 = vmatpush2.bf16.msra.mxu0 0
        %251 = vmatprep.subr.bf16.mxu0 0
        %252 = vmatpush2.bf16.msra.mxu0 0
        %253 = vmatprep.subr.bf16.mxu0 0
        %254 = vmatpush2.bf16.msra.mxu0 0
        %255 = vmatprep.subr.bf16.mxu0 0
        %256 = vmatpush2.bf16.msra.mxu0 0
        %257 = vmatprep.subr.bf16.mxu0 0
        %258 = vmatpush2.bf16.msra.mxu0 0
        %259 = vmatprep.subr.bf16.mxu0 0
        %260 = vmatpush2.bf16.msra.mxu0 0
        %261 = vmatprep.subr.bf16.mxu0 0
        %262 = vmatpush2.bf16.msra.mxu0 0
        %263 = vmatprep.mubr.bf16.mxu0 0
        %264 = vmatmul.mubr.bf16.gmra.mxu0 %v229
        %v265 = vpop.f32.mrf.mxu0
        %v266 = vadd.f32 %v213, %v265
        %v267 = vpop.f32.mrf.mxu0
        %v268 = vpop.f32.mrf.mxu0
        %v269 = vpop.f32.mrf.mxu0
        %270 = vdwg.mxu0
        %vm271 = vcmask 785408
        %272 = vst.msk [vmem:[%s200] sm:$0xff] %vm271, %v266
        %s273 = sand.u32 %s97, 1
        %s274 = scalar_lea.sflag [#allocation4], %s273
        %s275 = sand.u32 %s97, 1
        %s276 = smul.addr %s275, 8
        %s277 = scalar_lea.vmem [#allocation7], %s276
        // Predicated region
        $region41: #{tpu_custom_call.1} parent=31 // pred_check
          %p278 = pneg %p107
        $region42: #{tpu_custom_call.1} parent=31 // pred_check_branch
          %280 = sbr.rel (%p278) target = $region44
        $region43: #{tpu_custom_call.1} parent=31 // pred_region
          %s282 = ssub.s32 128, 128
          %283 = vsyncadd %s274, %s282
          %s284 = smul.addr %s21, 128
          %s285 = scalar_lea.hbm %s3, %s284
          %s287 = sshll.u32 %s277, 4
          %s288 = int_to_ptr.vmem [resolvable:$true] %s287
          %290 = dma.vmem_to_hbm [thread:$0]  %s288, 128, %s285, %s274
        $region44: #{tpu_custom_call.1} parent=31 // pred_fallthru
          _
      $region32: #{tpu_custom_call.1} parent=5 // pred_fallthru
        _
      %p291 = scmp.le.s32.totalorder 2, %s16
      // Predicated region
      $region45: #{tpu_custom_call.1} parent=5 // pred_check
        %p292 = pneg %p291
      $region46: #{tpu_custom_call.1} parent=5 // pred_check_branch
        %294 = sbr.rel (%p292) target = $region48
      $region47: #{tpu_custom_call.1} parent=5 // pred_region
        %s295 = ssub.s32 %s16, 2
        // Predicated region
        $region49: #{tpu_custom_call.1} parent=47 // pred_check
          %p296 = pneg %p113
        $region50: #{tpu_custom_call.1} parent=47 // pred_check_branch
          %298 = sbr.rel (%p296) target = $region52
        $region51: #{tpu_custom_call.1} parent=47 // pred_region
          %s299 = sand.u32 %s98, 1
          %s300 = scalar_lea.sflag [#allocation4], %s299
          %s301 = sand.u32 %s98, 1
          %s302 = smul.addr %s301, 8
          %s303 = scalar_lea.vmem [#allocation7], %s302
          %304 = dma.done %s300, 128
        $region52: #{tpu_custom_call.1} parent=47 // pred_fallthru
          _
      $region48: #{tpu_custom_call.1} parent=5 // pred_fallthru
        _
    $region6: #{tpu_custom_call.1} parent=1 // loop_footer
      %s20 = sadd.s32 1, %s16
    $region7: #{tpu_custom_call.1} parent=1 // loop_footer_branch
      %15 = sbr.rel target = $region3
    $region8: #{tpu_custom_call.1} parent=1 // loop_exit
      _
    %305 = vsyncpa [#allocation3], 1
    %s306 = scalar_lea.sflag [#allocation3], 1
    %307 = vsyncpa %s306, 1
    %308 = vsyncpa [#allocation6], 1
    %309 = vsyncpa [#allocation4], 1
    %s310 = scalar_lea.sflag [#allocation4], 1
    %311 = vsyncpa %s310, 1

</llo_original>
